<compile_context>
chip_gen: v7x
topology: tpu7x:2x2x1
jax: 0.10.0
libtpu: 0.0.40
codegen_flags: <defaults>
</compile_context>

<pallas_src>
import jax
import jax.numpy as jnp
from jax.experimental import pallas as pl
from jax.experimental.pallas import tpu as pltpu


def _rope_tables(seq_len: int, dim: int, lane_width: int, theta: float = 10000.0):
    """Equivalent of precompute_freqs_cis, expanded to interleaved [S, lane_width]
    tables: cos duplicated per pair, sin split into two pre-masked (even/odd) tables.
    If lane_width > dim, the tables are tiled along lanes (head-fold groups)."""
    half = dim // 2
    freqs = 1.0 / (theta ** (jnp.arange(half, dtype=jnp.float32) * 2.0 / dim))
    t = jnp.arange(seq_len, dtype=jnp.float32)
    angles = jnp.outer(t, freqs)                          # [S, D//2]
    cos = jnp.cos(angles)
    sin = jnp.sin(angles)
    zeros = jnp.zeros_like(sin)
    # cos_full[s, 2k] = cos_full[s, 2k+1] = cos(angle[s, k])
    cos_full = jnp.repeat(cos, 2, axis=-1)                # [S, D]
    # sin_even[s, 2k] = -sin(angle[s, k]); sin_even[s, 2k+1] = 0
    sin_even = jnp.stack([-sin, zeros], axis=-1).reshape(seq_len, dim)
    # sin_odd[s, 2k] = 0; sin_odd[s, 2k+1] = +sin(angle[s, k])
    sin_odd = jnp.stack([zeros, sin], axis=-1).reshape(seq_len, dim)
    g = lane_width // dim
    if g > 1:
        cos_full = jnp.tile(cos_full, (1, g))
        sin_even = jnp.tile(sin_even, (1, g))
        sin_odd = jnp.tile(sin_odd, (1, g))
    return (cos_full.astype(jnp.float32),
            sin_even.astype(jnp.float32),
            sin_odd.astype(jnp.float32))


def _choose_s_tile(S: int, row_bytes: int, budget_bytes: int = 2 << 20) -> int:
    """Largest multiple-of-8 divisor of S whose block stays under ~budget_bytes.
    Falls back to the full S (no S-tiling) if no clean divisor exists."""
    max_rows = max(8, budget_bytes // max(row_bytes, 1))
    if S <= max_rows:
        return S
    for t in range(min(S, max_rows), 7, -1):
        if S % t == 0 and t % 8 == 0:
            return t
    return S


def rope_kernel(x_ref, cos_ref, sin_e_ref, sin_o_ref, o_ref):
    # x_ref: [1, St, Hf, L]; cos/sin refs: [St, L]
    x = x_ref[...]                               # native dtype (no blanket upcast)
    St, L = cos_ref.shape
    cos = cos_ref[...].reshape(1, St, 1, L)      # f32 tables -> f32 FMA path
    sin_e = sin_e_ref[...].reshape(1, St, 1, L)
    sin_o = sin_o_ref[...].reshape(1, St, 1, L)

    # Pair partners via lane rolls (native dtype). Wrap-around lanes are killed by
    # the zero-masked sin tables (sin_e is zero on odd lanes, sin_o on even lanes).
    x_next = jnp.roll(x, -1, axis=-1)            # x[2k+1] seen at even lanes
    x_prev = jnp.roll(x, 1, axis=-1)             # x[2k]   seen at odd lanes

    # even lanes: x_e*cos - x_o*sin ; odd lanes: x_o*cos + x_e*sin
    out = x * cos + x_next * sin_e + x_prev * sin_o
    o_ref[...] = out.astype(o_ref.dtype)


def rope_pallas(x: jax.Array) -> jax.Array:
    B, S, H, D = x.shape
    assert D % 2 == 0, "head_dim must be even for RoPE"

    # Fold heads into the lane dimension when D < 128 so the block last dim is a
    # multiple of 128 (lane-dense loads/stores). Otherwise keep layout as-is.
    if D % 128 == 0:
        g = 1
    elif 128 % D == 0 and H % (128 // D) == 0:
        g = 128 // D
    else:
        g = 1  # fall back: correctness preserved, stores may be masked
    L = g * D
    Hf = H // g
    xr = x.reshape(B, S, Hf, L)

    cos_t, sin_e_t, sin_o_t = _rope_tables(S, D, L)

    row_bytes = Hf * L * x.dtype.itemsize        # bytes of one sequence row of x
    St = _choose_s_tile(S, row_bytes)
    grid = (B, S // St)

    itemsize = x.dtype.itemsize
    cost = pl.CostEstimate(
        flops=6 * B * S * H * D,                               # 3 mul + 3 add / elem
        transcendentals=0,
        bytes_accessed=2 * B * S * H * D * itemsize + 3 * S * L * 4,
    )

    out = pl.pallas_call(
        rope_kernel,
        out_shape=jax.ShapeDtypeStruct((B, S, Hf, L), x.dtype),
        grid_spec=pltpu.PrefetchScalarGridSpec(
            num_scalar_prefetch=0,
            grid=grid,
            in_specs=[
                pl.BlockSpec((1, St, Hf, L), lambda b, s: (b, s, 0, 0)),
                pl.BlockSpec((St, L), lambda b, s: (s, 0)),
                pl.BlockSpec((St, L), lambda b, s: (s, 0)),
                pl.BlockSpec((St, L), lambda b, s: (s, 0)),
            ],
            out_specs=pl.BlockSpec((1, St, Hf, L), lambda b, s: (b, s, 0, 0)),
        ),
        compiler_params=pltpu.CompilerParams(
            dimension_semantics=("parallel", "parallel"),
        ),
        cost_estimate=cost,
    )(xr, cos_t, sin_e_t, sin_o_t)
    return out.reshape(B, S, H, D)


def rope_ref(x: jax.Array) -> jax.Array:
    """Pure-JAX reference matching the PyTorch module exactly."""
    B, S, H, D = x.shape
    half = D // 2
    freqs = 1.0 / (10000.0 ** (jnp.arange(half, dtype=jnp.float32) * 2.0 / D))
    angles = jnp.outer(jnp.arange(S, dtype=jnp.float32), freqs)
    cos = jnp.cos(angles)[None, :, None, :]
    sin = jnp.sin(angles)[None, :, None, :]
    xf = x.astype(jnp.float32).reshape(B, S, H, half, 2)
    xe, xo = xf[..., 0], xf[..., 1]
    oe = xe * cos - xo * sin
    oo = xe * sin + xo * cos
    return jnp.stack([oe, oo], axis=-1).reshape(B, S, H, D).astype(x.dtype)


if __name__ == "__main__":
    # Small shapes consistent with the module's forward:
    # x: [batch=2, seq_len=8, n_heads=4, head_dim=32]
    key = jax.random.PRNGKey(0)
    x = jax.random.normal(key, (2, 8, 4, 32), dtype=jnp.float32)

    out = rope_pallas(x)
    out = jax.block_until_ready(out)

    ref = rope_ref(x)
    assert out.shape == x.shape and out.dtype == x.dtype
    assert jnp.allclose(out, ref, rtol=1e-5, atol=1e-5), "mismatch vs reference"

    print("KERNEL_OK")
</pallas_src>

<mosaic_0001>
module attributes {stable_mosaic.version = 11 : i64} {
  func.func @rope_kernel(%arg0: i32, %arg1: i32, %arg2: memref<1x8x1x128xf32, #tpu.memory_space<vmem>>, %arg3: memref<8x128xf32, #tpu.memory_space<vmem>>, %arg4: memref<8x128xf32, #tpu.memory_space<vmem>>, %arg5: memref<8x128xf32, #tpu.memory_space<vmem>>, %arg6: memref<1x8x1x128xf32, #tpu.memory_space<vmem>>) attributes {dimension_semantics = [#tpu.dimension_semantics<parallel>, #tpu.dimension_semantics<parallel>], iteration_bounds = array<i64: 2, 1>, scalar_prefetch = 0 : i64, scratch_operands = 0 : i64, tpu.core_type = #tpu.core_type<tc>, window_params = [{transform_indices = @transform_0, window_bounds = array<i64: 1, 8, 1, 128>}, {transform_indices = @transform_1, window_bounds = array<i64: 8, 128>}, {transform_indices = @transform_2, window_bounds = array<i64: 8, 128>}, {transform_indices = @transform_3, window_bounds = array<i64: 8, 128>}, {transform_indices = @transform_4, window_bounds = array<i64: 1, 8, 1, 128>}]} {
    %c0 = arith.constant 0 : index
    %c0_0 = arith.constant 0 : index
    %c0_1 = arith.constant 0 : index
    %c0_2 = arith.constant 0 : index
    %0 = vector.load %arg2[%c0, %c0_0, %c0_1, %c0_2] : memref<1x8x1x128xf32, #tpu.memory_space<vmem>>, vector<1x8x1x128xf32>
    %c0_3 = arith.constant 0 : index
    %c0_4 = arith.constant 0 : index
    %1 = vector.load %arg3[%c0_3, %c0_4] : memref<8x128xf32, #tpu.memory_space<vmem>>, vector<8x128xf32>
    %2 = vector.shape_cast %1 : vector<8x128xf32> to vector<1x8x1x128xf32>
    %c0_5 = arith.constant 0 : index
    %c0_6 = arith.constant 0 : index
    %3 = vector.load %arg4[%c0_5, %c0_6] : memref<8x128xf32, #tpu.memory_space<vmem>>, vector<8x128xf32>
    %4 = vector.shape_cast %3 : vector<8x128xf32> to vector<1x8x1x128xf32>
    %c0_7 = arith.constant 0 : index
    %c0_8 = arith.constant 0 : index
    %5 = vector.load %arg5[%c0_7, %c0_8] : memref<8x128xf32, #tpu.memory_space<vmem>>, vector<8x128xf32>
    %6 = vector.shape_cast %5 : vector<8x128xf32> to vector<1x8x1x128xf32>
    %7 = vector.extract_strided_slice %0 {offsets = [0, 0, 0, 1], sizes = [1, 8, 1, 127], strides = [1, 1, 1, 1]} : vector<1x8x1x128xf32> to vector<1x8x1x127xf32>
    %8 = vector.extract_strided_slice %0 {offsets = [0, 0, 0, 0], sizes = [1, 8, 1, 1], strides = [1, 1, 1, 1]} : vector<1x8x1x128xf32> to vector<1x8x1x1xf32>
    %9 = tpu.concatenate %7, %8 in 3 : vector<1x8x1x127xf32>, vector<1x8x1x1xf32> -> vector<1x8x1x128xf32>
    %10 = vector.extract_strided_slice %0 {offsets = [0, 0, 0, 127], sizes = [1, 8, 1, 1], strides = [1, 1, 1, 1]} : vector<1x8x1x128xf32> to vector<1x8x1x1xf32>
    %11 = vector.extract_strided_slice %0 {offsets = [0, 0, 0, 0], sizes = [1, 8, 1, 127], strides = [1, 1, 1, 1]} : vector<1x8x1x128xf32> to vector<1x8x1x127xf32>
    %12 = tpu.concatenate %10, %11 in 3 : vector<1x8x1x1xf32>, vector<1x8x1x127xf32> -> vector<1x8x1x128xf32>
    %13 = arith.mulf %0, %2 : vector<1x8x1x128xf32>
    %14 = arith.mulf %9, %4 : vector<1x8x1x128xf32>
    %15 = arith.addf %13, %14 : vector<1x8x1x128xf32>
    %16 = arith.mulf %12, %6 : vector<1x8x1x128xf32>
    %17 = arith.addf %15, %16 : vector<1x8x1x128xf32>
    %c0_9 = arith.constant 0 : index
    %c0_10 = arith.constant 0 : index
    %c0_11 = arith.constant 0 : index
    %c0_12 = arith.constant 0 : index
    %18 = vector.load %arg6[%c0_9, %c0_10, %c0_11, %c0_12] : memref<1x8x1x128xf32, #tpu.memory_space<vmem>>, vector<1x8x1x128xf32>
    tpu.vector_store %arg6[%c0_9, %c0_10, %c0_11, %c0_12], %17 {strides = array<i32>} : memref<1x8x1x128xf32, #tpu.memory_space<vmem>>, vector<1x8x1x128xf32>,
    return
  }
  func.func @transform_0(%arg0: i32, %arg1: i32) -> (i32, i32, i32, i32) {
    %c0_i32 = arith.constant 0 : i32
    %c0_i32_0 = arith.constant 0 : i32
    %c0_i32_1 = arith.constant 0 : i32
    return %arg0, %arg1, %c0_i32, %c0_i32_0 : i32, i32, i32, i32
  }
  func.func @transform_1(%arg0: i32, %arg1: i32) -> (i32, i32) {
    %c0_i32 = arith.constant 0 : i32
    %c0_i32_0 = arith.constant 0 : i32
    return %arg1, %c0_i32 : i32, i32
  }
  func.func @transform_2(%arg0: i32, %arg1: i32) -> (i32, i32) {
    %c0_i32 = arith.constant 0 : i32
    %c0_i32_0 = arith.constant 0 : i32
    return %arg1, %c0_i32 : i32, i32
  }
  func.func @transform_3(%arg0: i32, %arg1: i32) -> (i32, i32) {
    %c0_i32 = arith.constant 0 : i32
    %c0_i32_0 = arith.constant 0 : i32
    return %arg1, %c0_i32 : i32, i32
  }
  func.func @transform_4(%arg0: i32, %arg1: i32) -> (i32, i32, i32, i32) {
    %c0_i32 = arith.constant 0 : i32
    %c0_i32_0 = arith.constant 0 : i32
    %c0_i32_1 = arith.constant 0 : i32
    return %arg0, %arg1, %c0_i32, %c0_i32_0 : i32, i32, i32, i32
  }
}

</mosaic_0001>

<llo_original>
// kernel: tpu_custom_call.1
$region0: #{tpu_custom_call.1}
  #allocation0 [shape = 'u32[]', space=smem, size = 0x4, offset = 0x4, fixed_abs, tag = 'smem constant byte address 0x4 - core index']
  #allocation1 [shape = 'u32[144,128]{1,0:T(1,128)}', space=vmem, size = 0x12000, scoped, tag = 'internal scratch']
  %s0 = inlined_call_operand.hbm [shape: f32[2,8,1,128], index: 0, kind: input, shape index: {}]
  %s1 = inlined_call_operand.hbm [shape: f32[8,128], index: 1, kind: input, shape index: {}]
  %s2 = inlined_call_operand.hbm [shape: f32[8,128], index: 2, kind: input, shape index: {}]
  %s3 = inlined_call_operand.vmem [shape: f32[8,128], index: 3, kind: input, shape index: {}]
  %s4 = inlined_call_operand.hbm [shape: f32[2,8,1,128], index: 4, kind: output, shape index: {}]
  %s5 = sld [smem:[#allocation0]]
  $region61: #{tpu_custom_call.1} parent=0
    _
  %s7 = ssub.s32 1, %s5
  %s8 = scalar_select 0, %s7, %s5
  $region1: #{tpu_custom_call.1} parent=0
    #allocation2 [shape = 'u8[8192]{0}', space=vmem, size = 0x2000, scoped, tag = 'input window, operand 0']
    #allocation3 [shape = 's32[2]{0}', space=sflag, size = 0x8, scoped, tag = 'scoped memory for tpu_custom_call.1']
    #allocation4 [shape = 's32[2]{0}', space=sflag, size = 0x8, scoped, tag = 'scoped memory for tpu_custom_call.1']
    #allocation5 [shape = 'u8[4096]{0}', space=vmem, size = 0x1000, scoped, tag = 'input window, operand 1, single buffered']
    #allocation6 [shape = 's32[1]{0}', space=sflag, size = 0x4, scoped, tag = 'scoped memory for tpu_custom_call.1']
    #allocation7 [shape = 'u8[4096]{0}', space=vmem, size = 0x1000, scoped, tag = 'input window, operand 2, single buffered']
    #allocation8 [shape = 'u8[8192]{0}', space=vmem, size = 0x2000, scoped, tag = 'output window, operand 0']
    %9 = vsyncpa [#allocation3], 0
    %s10 = scalar_lea.sflag [#allocation3], 1
    %11 = vsyncpa %s10, 0
    %12 = vsyncpa [#allocation6], 0
    %13 = vsyncpa [#allocation4], 0
    %s14 = scalar_lea.sflag [#allocation4], 1
    %15 = vsyncpa %s14, 0
    loop: start=0, step=1, limit=4
    $region2: #{tpu_custom_call.1} parent=1 // loop_pre_header
      _
    $region3: #{tpu_custom_call.1} parent=1 // loop_header
      %s17 = sphi 0, %s21
      %p18 = scmp.ge.s32.totalorder %s17, 4
      %s24 = sphi 0, %s36
      %s25 = sphi 0, %s32
      %s26 = sphi 0, %s24
      %s27 = sphi 0, %s25
      %s28 = sphi 0, %s26
      %s29 = sphi 0, %s27
      %s41 = sphi 0, %s43
      %s44 = sphi 0, %s41
      %s45 = sphi 0, %s44
      %s61 = sphi 0, %s45
      %s67 = sphi 0, %s69
      %s70 = sphi 0, %s67
      %s71 = sphi 0, %s70
      %s87 = sphi 0, %s71
      %s93 = sphi 0, %s95
      %s96 = sphi 0, %s93
      %s97 = sphi 0, %s96
      %s113 = sphi 0, %s97
      %s119 = sphi 0, %s121
      %s122 = sphi 0, %s119
      %s123 = sphi 0, %s122
      %s139 = sphi 0, %s123
      %s147 = sphi 0, %s149
      %s150 = sphi 0, %s147
      %s151 = sphi 0, %s150
      %s167 = sphi 0, %s151
    $region4: #{tpu_custom_call.1} parent=1 // loop_header_branch
      %20 = sbr.rel (%p18) target = $region8
    $region5: #{tpu_custom_call.1} parent=1 // loop_body
      %s22 = ssub.s32 %s17, 1
      %s23 = ssub.s32 %s17, 2
      %s30 = sadd.s32 1, %s25
      %p31 = scmp.ge.s32.totalorder %s30, 1
      %s32 = scalar_select %p31, 0, %s30
      %s33 = sadd.s32 1, %s24
      %s34 = scalar_select %p31, %s33, %s24
      %p35 = scmp.ge.s32.totalorder %s34, 2
      %s36 = scalar_select %p35, 0, %s34
      %s37 = ssub.s32 %s24, %s36
      %s38 = ssub.s32 %s25, %s32
      %s39 = sor.u32 %s37, %s38
      %p40 = scmp.eq.s32.totalorder %s39, 0
      %s42 = sadd.s32 %s41, 1
      %s43 = scalar_select %p40, %s41, %s42
      %p46 = pneg %p40
      %p47 = scmp.eq.s32.totalorder %s17, 1
      %p48 = por %p46, %p47
      %p49 = scmp.ne.s32.totalorder %s41, %s44
      %p50 = scmp.eq.s32.totalorder %s17, 0
      %p51 = por %p49, %p50
      %p52 = scmp.ne.s32.totalorder %s41, %s44
      %p53 = scmp.eq.s32.totalorder %s22, 1
      %p54 = por %p52, %p53
      %p55 = scmp.ne.s32.totalorder %s44, %s45
      %p56 = scmp.eq.s32.totalorder %s22, 0
      %p57 = por %p55, %p56
      %p58 = scmp.ne.s32.totalorder %s44, %s45
      %p59 = scmp.eq.s32.totalorder %s23, 1
      %p60 = por %p58, %p59
      %p62 = scmp.ne.s32.totalorder %s45, %s61
      %p63 = scmp.eq.s32.totalorder %s23, 0
      %p64 = por %p62, %p63
      %s65 = ssub.s32 %s25, %s32
      %p66 = scmp.eq.s32.totalorder %s65, 0
      %s68 = sadd.s32 %s67, 1
      %s69 = scalar_select %p66, %s67, %s68
      %p72 = pneg %p66
      %p73 = scmp.eq.s32.totalorder %s17, 1
      %p74 = por %p72, %p73
      %p75 = scmp.ne.s32.totalorder %s67, %s70
      %p76 = scmp.eq.s32.totalorder %s17, 0
      %p77 = por %p75, %p76
      %p78 = scmp.ne.s32.totalorder %s67, %s70
      %p79 = scmp.eq.s32.totalorder %s22, 1
      %p80 = por %p78, %p79
      %p81 = scmp.ne.s32.totalorder %s70, %s71
      %p82 = scmp.eq.s32.totalorder %s22, 0
      %p83 = por %p81, %p82
      %p84 = scmp.ne.s32.totalorder %s70, %s71
      %p85 = scmp.eq.s32.totalorder %s23, 1
      %p86 = por %p84, %p85
      %p88 = scmp.ne.s32.totalorder %s71, %s87
      %p89 = scmp.eq.s32.totalorder %s23, 0
      %p90 = por %p88, %p89
      %s91 = ssub.s32 %s25, %s32
      %p92 = scmp.eq.s32.totalorder %s91, 0
      %s94 = sadd.s32 %s93, 1
      %s95 = scalar_select %p92, %s93, %s94
      %p98 = pneg %p92
      %p99 = scmp.eq.s32.totalorder %s17, 1
      %p100 = por %p98, %p99
      %p101 = scmp.ne.s32.totalorder %s93, %s96
      %p102 = scmp.eq.s32.totalorder %s17, 0
      %p103 = por %p101, %p102
      %p104 = scmp.ne.s32.totalorder %s93, %s96
      %p105 = scmp.eq.s32.totalorder %s22, 1
      %p106 = por %p104, %p105
      %p107 = scmp.ne.s32.totalorder %s96, %s97
      %p108 = scmp.eq.s32.totalorder %s22, 0
      %p109 = por %p107, %p108
      %p110 = scmp.ne.s32.totalorder %s96, %s97
      %p111 = scmp.eq.s32.totalorder %s23, 1
      %p112 = por %p110, %p111
      %p114 = scmp.ne.s32.totalorder %s97, %s113
      %p115 = scmp.eq.s32.totalorder %s23, 0
      %p116 = por %p114, %p115
      %s117 = ssub.s32 %s25, %s32
      %p118 = scmp.eq.s32.totalorder %s117, 0
      %s120 = sadd.s32 %s119, 1
      %s121 = scalar_select %p118, %s119, %s120
      %p124 = pneg %p118
      %p125 = scmp.eq.s32.totalorder %s17, 1
      %p126 = por %p124, %p125
      %p127 = scmp.ne.s32.totalorder %s119, %s122
      %p128 = scmp.eq.s32.totalorder %s17, 0
      %p129 = por %p127, %p128
      %p130 = scmp.ne.s32.totalorder %s119, %s122
      %p131 = scmp.eq.s32.totalorder %s22, 1
      %p132 = por %p130, %p131
      %p133 = scmp.ne.s32.totalorder %s122, %s123
      %p134 = scmp.eq.s32.totalorder %s22, 0
      %p135 = por %p133, %p134
      %p136 = scmp.ne.s32.totalorder %s122, %s123
      %p137 = scmp.eq.s32.totalorder %s23, 1
      %p138 = por %p136, %p137
      %p140 = scmp.ne.s32.totalorder %s123, %s139
      %p141 = scmp.eq.s32.totalorder %s23, 0
      %p142 = por %p140, %p141
      %s143 = ssub.s32 %s24, %s36
      %s144 = ssub.s32 %s25, %s32
      %s145 = sor.u32 %s143, %s144
      %p146 = scmp.eq.s32.totalorder %s145, 0
      %s148 = sadd.s32 %s147, 1
      %s149 = scalar_select %p146, %s147, %s148
      %p152 = pneg %p146
      %p153 = scmp.eq.s32.totalorder %s17, 1
      %p154 = por %p152, %p153
      %p155 = scmp.ne.s32.totalorder %s147, %s150
      %p156 = scmp.eq.s32.totalorder %s17, 0
      %p157 = por %p155, %p156
      %p158 = scmp.ne.s32.totalorder %s147, %s150
      %p159 = scmp.eq.s32.totalorder %s22, 1
      %p160 = por %p158, %p159
      %p161 = scmp.ne.s32.totalorder %s150, %s151
      %p162 = scmp.eq.s32.totalorder %s22, 0
      %p163 = por %p161, %p162
      %p164 = scmp.ne.s32.totalorder %s150, %s151
      %p165 = scmp.eq.s32.totalorder %s23, 1
      %p166 = por %p164, %p165
      %p168 = scmp.ne.s32.totalorder %s151, %s167
      %p169 = scmp.eq.s32.totalorder %s23, 0
      %p170 = por %p168, %p169
      %p171 = scmp.le.s32.totalorder 1, %s17
      %p172 = scmp.lt.s32.totalorder %s17, 3
      %p173 = pnand %p171, %p172
      %p174 = pneg %p173
      // Predicated region
      $region9: #{tpu_custom_call.1} parent=5 // pred_check
        _
      $region10: #{tpu_custom_call.1} parent=5 // pred_check_branch
        %176 = sbr.rel (%p173) target = $region12
      $region11: #{tpu_custom_call.1} parent=5 // pred_region
        %s177 = ssub.s32 %s17, 1
        // Predicated region
        $region13: #{tpu_custom_call.1} parent=11 // pred_check
          %p178 = pneg %p83
        $region14: #{tpu_custom_call.1} parent=11 // pred_check_branch
          %180 = sbr.rel (%p178) target = $region16
        $region15: #{tpu_custom_call.1} parent=11 // pred_region
          %s182 = ssub.s32 128, 128
          %183 = vsyncadd [#allocation6], %s182
          %s184 = smul.addr %s27, 128
          %s185 = scalar_lea.hbm %s1, %s184
          %s187 = sshll.u32 [#allocation5], 4
          %s188 = int_to_ptr.vmem [resolvable:$true] %s187
          %190 = dma.hbm_to_vmem [thread:$0]  %s185, 128, %s188, [#allocation6]
        $region16: #{tpu_custom_call.1} parent=11 // pred_fallthru
          _
        // Predicated region
        $region17: #{tpu_custom_call.1} parent=11 // pred_check
          %p191 = pneg %p109
        $region18: #{tpu_custom_call.1} parent=11 // pred_check_branch
          %193 = sbr.rel (%p191) target = $region20
        $region19: #{tpu_custom_call.1} parent=11 // pred_region
          %s195 = ssub.s32 128, 128
          %196 = vsyncadd [#allocation6], %s195
          %s197 = smul.addr %s27, 128
          %s198 = scalar_lea.hbm %s2, %s197
          %s200 = sshll.u32 [#allocation7], 4
          %s201 = int_to_ptr.vmem [resolvable:$true] %s200
          %203 = dma.hbm_to_vmem [thread:$0]  %s198, 128, %s201, [#allocation6]
        $region20: #{tpu_custom_call.1} parent=11 // pred_fallthru
          _
        // Predicated region
        $region21: #{tpu_custom_call.1} parent=11 // pred_check
          %p204 = pneg %p135
        $region22: #{tpu_custom_call.1} parent=11 // pred_check_branch
          %206 = sbr.rel (%p204) target = $region24
        $region23: #{tpu_custom_call.1} parent=11 // pred_region
          %p207 = scmp.lt.s32.totalorder %s27, 0
          %s208 = scalar_select %p207, %s27, 0
          %s209 = smul.addr %s208, 8
          %s210 = scalar_lea.vmem %s3, %s209
        $region24: #{tpu_custom_call.1} parent=11 // pred_fallthru
          _
      $region12: #{tpu_custom_call.1} parent=5 // pred_fallthru
        _
      %p211 = scmp.lt.s32.totalorder %s17, 2
      // Predicated region
      $region25: #{tpu_custom_call.1} parent=5 // pred_check
        %p212 = pneg %p211
      $region26: #{tpu_custom_call.1} parent=5 // pred_check_branch
        %214 = sbr.rel (%p212) target = $region28
      $region27: #{tpu_custom_call.1} parent=5 // pred_region
        // Predicated region
        $region29: #{tpu_custom_call.1} parent=27 // pred_check
          %p215 = pneg %p51
        $region30: #{tpu_custom_call.1} parent=27 // pred_check_branch
          %217 = sbr.rel (%p215) target = $region32
        $region31: #{tpu_custom_call.1} parent=27 // pred_region
          %s218 = sand.u32 %s41, 1
          %s219 = scalar_lea.sflag [#allocation3], %s218
          %s220 = sand.u32 %s41, 1
          %s221 = smul.addr %s220, 8
          %s222 = scalar_lea.vmem [#allocation2], %s221
          %s223 = smul.u32 8, %s25
          %s225 = ssub.s32 128, 128
          %226 = vsyncadd %s219, %s225
          %s227 = smul.addr %s24, 8
          %s228 = sadd.s32 %s223, %s227
          %s229 = smul.addr %s228, 16
          %s230 = scalar_lea.hbm %s0, %s229
          %s231 = sshll.u32 %s222, 4
          %s232 = int_to_ptr.vmem [resolvable:$true] %s231
          %237 = dma.hbm_to_vmem [thread:$0]  %s230, 128, %s232, %s219, 16, 16, 1
        $region32: #{tpu_custom_call.1} parent=27 // pred_fallthru
          _
      $region28: #{tpu_custom_call.1} parent=5 // pred_fallthru
        _
      %p238 = scmp.le.s32.totalorder 1, %s17
      %p239 = scmp.lt.s32.totalorder %s17, 3
      %p240 = pnand %p238, %p239
      %p241 = pneg %p240
      // Predicated region
      $region33: #{tpu_custom_call.1} parent=5 // pred_check
        _
      $region34: #{tpu_custom_call.1} parent=5 // pred_check_branch
        %243 = sbr.rel (%p240) target = $region36
      $region35: #{tpu_custom_call.1} parent=5 // pred_region
        %s244 = ssub.s32 %s17, 1
        %s245 = sand.u32 %s44, 1
        %s246 = scalar_lea.sflag [#allocation3], %s245
        %s247 = sand.u32 %s44, 1
        %s248 = smul.addr %s247, 8
        %s249 = scalar_lea.vmem [#allocation2], %s248
        // Predicated region
        $region37: #{tpu_custom_call.1} parent=35 // pred_check
          %p250 = pneg %p57
        $region38: #{tpu_custom_call.1} parent=35 // pred_check_branch
          %252 = sbr.rel (%p250) target = $region40
        $region39: #{tpu_custom_call.1} parent=35 // pred_region
          %253 = dma.done %s246, 128
        $region40: #{tpu_custom_call.1} parent=35 // pred_fallthru
          _
        // Predicated region
        $region41: #{tpu_custom_call.1} parent=35 // pred_check
          %p254 = pneg %p83
        $region42: #{tpu_custom_call.1} parent=35 // pred_check_branch
          %256 = sbr.rel (%p254) target = $region44
        $region43: #{tpu_custom_call.1} parent=35 // pred_region
          %257 = dma.done [#allocation6], 128
        $region44: #{tpu_custom_call.1} parent=35 // pred_fallthru
          _
        // Predicated region
        $region45: #{tpu_custom_call.1} parent=35 // pred_check
          %p258 = pneg %p109
        $region46: #{tpu_custom_call.1} parent=35 // pred_check_branch
          %260 = sbr.rel (%p258) target = $region48
        $region47: #{tpu_custom_call.1} parent=35 // pred_region
          %261 = dma.done [#allocation6], 128
        $region48: #{tpu_custom_call.1} parent=35 // pred_fallthru
          _
        %s262 = sand.u32 %s44, 1
        %s263 = scalar_lea.sflag [#allocation3], %s262
        %s264 = sand.u32 %s44, 1
        %s265 = smul.addr %s264, 8
        %s266 = scalar_lea.vmem [#allocation2], %s265
        %p267 = pneg %p57
        %p268 = pneg %p54
        %p269 = pneg %p83
        %p270 = pneg %p80
        %p271 = pneg %p109
        %p272 = pneg %p106
        %p273 = scmp.lt.s32.totalorder %s27, 0
        %s274 = scalar_select %p273, %s27, 0
        %s275 = smul.addr %s274, 8
        %s276 = scalar_lea.vmem %s3, %s275
        %p277 = pneg %p135
        %p278 = pneg %p132
        %p279 = pneg %p163
        %p280 = pneg %p160
        %s281 = sand.u32 %s150, 1
        %s282 = scalar_lea.sflag [#allocation4], %s281
        %s283 = sand.u32 %s150, 1
        %s284 = smul.addr %s283, 8
        %s285 = scalar_lea.vmem [#allocation8], %s284
        %s286 = smul.u32 8, %s27
        %p287 = scmp.lt.s32.totalorder %s27, 0
        %s288 = scalar_select %p287, %s27, 0
        %s289 = smul.addr %s288, 8
        %s290 = scalar_lea.vmem %s3, %s289
        %s291 = smul.u32 8, %s27
        %v292 = vld [vmem:[%s249] sm:$0x1]
        %v293 = vld [vmem:[%s249 + $0x1] sm:$0x1]
        %v294 = vld [vmem:[%s249 + $0x2] sm:$0x1]
        %v295 = vld [vmem:[%s249 + $0x3] sm:$0x1]
        %v296 = vld [vmem:[%s249 + $0x4] sm:$0x1]
        %v297 = vld [vmem:[%s249 + $0x5] sm:$0x1]
        %v298 = vld [vmem:[%s249 + $0x6] sm:$0x1]
        %v299 = vld [vmem:[%s249 + $0x7] sm:$0x1]
        %v300 = vld [vmem:[#allocation5] sm:$0xff]
        %v302 = vcombine.high %v300, %v300
        %v304 = vunpack.c.l.s4 1966171168
        %v305 = vunpack.c.0.s8 %v304
        %v306 = vlaneseq
        %v307 = vshrl.u32 %v306, 7
        %v308 = vsub.s32 %v305, %v307
        %v309 = vrot.slane %v300, %v308
        %v311 = vunpack.c.l.s4 1966171168
        %v312 = vunpack.c.0.s8 %v311
        %v313 = vlaneseq
        %v314 = vshrl.u32 %v313, 7
        %v315 = vsub.s32 %v312, %v314
        %v316 = vrot.slane %v302, %v315
        %v317 = vcombine.high %v309, %v309
        %v318 = vcombine.high %v316, %v316
        %v320 = vunpack.c.l.s4 1966171168
        %v321 = vunpack.c.0.s8 %v320
        %v322 = vlaneseq
        %v323 = vshrl.u32 %v322, 7
        %v324 = vsub.s32 %v321, %v323
        %v325 = vrot.slane %v309, %v324
        %v327 = vunpack.c.l.s4 1966171168
        %v328 = vunpack.c.0.s8 %v327
        %v329 = vlaneseq
        %v330 = vshrl.u32 %v329, 7
        %v331 = vsub.s32 %v328, %v330
        %v332 = vrot.slane %v316, %v331
        %v334 = vunpack.c.l.s4 1966171168
        %v335 = vunpack.c.0.s8 %v334
        %v336 = vlaneseq
        %v337 = vshrl.u32 %v336, 7
        %v338 = vsub.s32 %v335, %v337
        %v339 = vrot.slane %v317, %v338
        %v341 = vunpack.c.l.s4 1966171168
        %v342 = vunpack.c.0.s8 %v341
        %v343 = vlaneseq
        %v344 = vshrl.u32 %v343, 7
        %v345 = vsub.s32 %v342, %v344
        %v346 = vrot.slane %v318, %v345
        %v347 = vcombine.high %v325, %v325
        %v348 = vcombine.high %v332, %v332
        %v349 = vcombine.high %v339, %v339
        %v350 = vcombine.high %v346, %v346
        %v359 = vld [vmem:[#allocation7] sm:$0xff]
        %v361 = vcombine.high %v359, %v359
        %v363 = vunpack.c.l.s4 1966171168
        %v364 = vunpack.c.0.s8 %v363
        %v365 = vlaneseq
        %v366 = vshrl.u32 %v365, 7
        %v367 = vsub.s32 %v364, %v366
        %v368 = vrot.slane %v359, %v367
        %v370 = vunpack.c.l.s4 1966171168
        %v371 = vunpack.c.0.s8 %v370
        %v372 = vlaneseq
        %v373 = vshrl.u32 %v372, 7
        %v374 = vsub.s32 %v371, %v373
        %v375 = vrot.slane %v361, %v374
        %v376 = vcombine.high %v368, %v368
        %v377 = vcombine.high %v375, %v375
        %v379 = vunpack.c.l.s4 1966171168
        %v380 = vunpack.c.0.s8 %v379
        %v381 = vlaneseq
        %v382 = vshrl.u32 %v381, 7
        %v383 = vsub.s32 %v380, %v382
        %v384 = vrot.slane %v368, %v383
        %v386 = vunpack.c.l.s4 1966171168
        %v387 = vunpack.c.0.s8 %v386
        %v388 = vlaneseq
        %v389 = vshrl.u32 %v388, 7
        %v390 = vsub.s32 %v387, %v389
        %v391 = vrot.slane %v375, %v390
        %v393 = vunpack.c.l.s4 1966171168
        %v394 = vunpack.c.0.s8 %v393
        %v395 = vlaneseq
        %v396 = vshrl.u32 %v395, 7
        %v397 = vsub.s32 %v394, %v396
        %v398 = vrot.slane %v376, %v397
        %v400 = vunpack.c.l.s4 1966171168
        %v401 = vunpack.c.0.s8 %v400
        %v402 = vlaneseq
        %v403 = vshrl.u32 %v402, 7
        %v404 = vsub.s32 %v401, %v403
        %v405 = vrot.slane %v377, %v404
        %v406 = vcombine.high %v384, %v384
        %v407 = vcombine.high %v391, %v391
        %v408 = vcombine.high %v398, %v398
        %v409 = vcombine.high %v405, %v405
        %v418 = vld [vmem:[%s290] sm:$0xff]
        %v420 = vcombine.high %v418, %v418
        %v422 = vunpack.c.l.s4 1966171168
        %v423 = vunpack.c.0.s8 %v422
        %v424 = vlaneseq
        %v425 = vshrl.u32 %v424, 7
        %v426 = vsub.s32 %v423, %v425
        %v427 = vrot.slane %v418, %v426
        %v429 = vunpack.c.l.s4 1966171168
        %v430 = vunpack.c.0.s8 %v429
        %v431 = vlaneseq
        %v432 = vshrl.u32 %v431, 7
        %v433 = vsub.s32 %v430, %v432
        %v434 = vrot.slane %v420, %v433
        %v435 = vcombine.high %v427, %v427
        %v436 = vcombine.high %v434, %v434
        %v438 = vunpack.c.l.s4 1966171168
        %v439 = vunpack.c.0.s8 %v438
        %v440 = vlaneseq
        %v441 = vshrl.u32 %v440, 7
        %v442 = vsub.s32 %v439, %v441
        %v443 = vrot.slane %v427, %v442
        %v445 = vunpack.c.l.s4 1966171168
        %v446 = vunpack.c.0.s8 %v445
        %v447 = vlaneseq
        %v448 = vshrl.u32 %v447, 7
        %v449 = vsub.s32 %v446, %v448
        %v450 = vrot.slane %v434, %v449
        %v452 = vunpack.c.l.s4 1966171168
        %v453 = vunpack.c.0.s8 %v452
        %v454 = vlaneseq
        %v455 = vshrl.u32 %v454, 7
        %v456 = vsub.s32 %v453, %v455
        %v457 = vrot.slane %v435, %v456
        %v459 = vunpack.c.l.s4 1966171168
        %v460 = vunpack.c.0.s8 %v459
        %v461 = vlaneseq
        %v462 = vshrl.u32 %v461, 7
        %v463 = vsub.s32 %v460, %v462
        %v464 = vrot.slane %v436, %v463
        %v465 = vcombine.high %v443, %v443
        %v466 = vcombine.high %v450, %v450
        %v467 = vcombine.high %v457, %v457
        %v468 = vcombine.high %v464, %v464
        %v485 = vlaneseq
        %v486 = vshrl.u32 %v485, 7
        %v487 = vsub.s32 0, %v486
        %v488 = vrot.slane %v292, %v487
        %v489 = vlaneseq
        %v490 = vshrl.u32 %v489, 7
        %v491 = vsub.s32 0, %v490
        %v492 = vrot.slane %v293, %v491
        %v493 = vlaneseq
        %v494 = vshrl.u32 %v493, 7
        %v495 = vsub.s32 0, %v494
        %v496 = vrot.slane %v294, %v495
        %v497 = vlaneseq
        %v498 = vshrl.u32 %v497, 7
        %v499 = vsub.s32 0, %v498
        %v500 = vrot.slane %v295, %v499
        %v501 = vlaneseq
        %v502 = vshrl.u32 %v501, 7
        %v503 = vsub.s32 0, %v502
        %v504 = vrot.slane %v296, %v503
        %v505 = vlaneseq
        %v506 = vshrl.u32 %v505, 7
        %v507 = vsub.s32 0, %v506
        %v508 = vrot.slane %v297, %v507
        %v509 = vlaneseq
        %v510 = vshrl.u32 %v509, 7
        %v511 = vsub.s32 0, %v510
        %v512 = vrot.slane %v298, %v511
        %v513 = vlaneseq
        %v514 = vshrl.u32 %v513, 7
        %v515 = vsub.s32 0, %v514
        %v516 = vrot.slane %v299, %v515
        %517 = vrot.lane.b32.xlu0 %v488, 127
        %v518 = vpop.permute.xlu0 %517
        %519 = vrot.lane.b32.xlu0 %v492, 127
        %v520 = vpop.permute.xlu0 %519
        %521 = vrot.lane.b32.xlu0 %v496, 127
        %v522 = vpop.permute.xlu0 %521
        %523 = vrot.lane.b32.xlu0 %v500, 127
        %v524 = vpop.permute.xlu0 %523
        %525 = vrot.lane.b32.xlu0 %v504, 127
        %v526 = vpop.permute.xlu0 %525
        %527 = vrot.lane.b32.xlu0 %v508, 127
        %v528 = vpop.permute.xlu0 %527
        %529 = vrot.lane.b32.xlu0 %v512, 127
        %v530 = vpop.permute.xlu0 %529
        %531 = vrot.lane.b32.xlu0 %v516, 127
        %v532 = vpop.permute.xlu0 %531
        %541 = vrot.lane.b32.xlu0 %v488, 1
        %v542 = vpop.permute.xlu0 %541
        %543 = vrot.lane.b32.xlu0 %v492, 1
        %v544 = vpop.permute.xlu0 %543
        %545 = vrot.lane.b32.xlu0 %v496, 1
        %v546 = vpop.permute.xlu0 %545
        %547 = vrot.lane.b32.xlu0 %v500, 1
        %v548 = vpop.permute.xlu0 %547
        %549 = vrot.lane.b32.xlu0 %v504, 1
        %v550 = vpop.permute.xlu0 %549
        %551 = vrot.lane.b32.xlu0 %v508, 1
        %v552 = vpop.permute.xlu0 %551
        %553 = vrot.lane.b32.xlu0 %v512, 1
        %v554 = vpop.permute.xlu0 %553
        %555 = vrot.lane.b32.xlu0 %v516, 1
        %v556 = vpop.permute.xlu0 %555
        %v565 = vmul.f32 %v292, %v325
        %v566 = vmul.f32 %v293, %v339
        %v567 = vmul.f32 %v294, %v347
        %v568 = vmul.f32 %v295, %v349
        %v569 = vmul.f32 %v296, %v332
        %v570 = vmul.f32 %v297, %v346
        %v571 = vmul.f32 %v298, %v348
        %v572 = vmul.f32 %v299, %v350
        %v573 = vmul.f32 %v518, %v384
        %v574 = vmul.f32 %v520, %v398
        %v575 = vmul.f32 %v522, %v406
        %v576 = vmul.f32 %v524, %v408
        %v577 = vmul.f32 %v526, %v391
        %v578 = vmul.f32 %v528, %v405
        %v579 = vmul.f32 %v530, %v407
        %v580 = vmul.f32 %v532, %v409
        %v581 = vadd.f32 %v565, %v573
        %v582 = vadd.f32 %v566, %v574
        %v583 = vadd.f32 %v567, %v575
        %v584 = vadd.f32 %v568, %v576
        %v585 = vadd.f32 %v569, %v577
        %v586 = vadd.f32 %v570, %v578
        %v587 = vadd.f32 %v571, %v579
        %v588 = vadd.f32 %v572, %v580
        %v589 = vmul.f32 %v542, %v443
        %v590 = vmul.f32 %v544, %v457
        %v591 = vmul.f32 %v546, %v465
        %v592 = vmul.f32 %v548, %v467
        %v593 = vmul.f32 %v550, %v450
        %v594 = vmul.f32 %v552, %v464
        %v595 = vmul.f32 %v554, %v466
        %v596 = vmul.f32 %v556, %v468
        %v597 = vadd.f32 %v581, %v589
        %v598 = vadd.f32 %v582, %v590
        %v599 = vadd.f32 %v583, %v591
        %v600 = vadd.f32 %v584, %v592
        %v601 = vadd.f32 %v585, %v593
        %v602 = vadd.f32 %v586, %v594
        %v603 = vadd.f32 %v587, %v595
        %v604 = vadd.f32 %v588, %v596
        %605 = vst [vmem:[%s285] sm:$0x1] %v597
        %606 = vst [vmem:[%s285 + $0x1] sm:$0x1] %v598
        %607 = vst [vmem:[%s285 + $0x2] sm:$0x1] %v599
        %608 = vst [vmem:[%s285 + $0x3] sm:$0x1] %v600
        %609 = vst [vmem:[%s285 + $0x4] sm:$0x1] %v601
        %610 = vst [vmem:[%s285 + $0x5] sm:$0x1] %v602
        %611 = vst [vmem:[%s285 + $0x6] sm:$0x1] %v603
        %612 = vst [vmem:[%s285 + $0x7] sm:$0x1] %v604
        %s613 = sand.u32 %s150, 1
        %s614 = scalar_lea.sflag [#allocation4], %s613
        %s615 = sand.u32 %s150, 1
        %s616 = smul.addr %s615, 8
        %s617 = scalar_lea.vmem [#allocation8], %s616
        // Predicated region
        $region49: #{tpu_custom_call.1} parent=35 // pred_check
          %p618 = pneg %p160
        $region50: #{tpu_custom_call.1} parent=35 // pred_check_branch
          %620 = sbr.rel (%p618) target = $region52
        $region51: #{tpu_custom_call.1} parent=35 // pred_region
          %s621 = smul.u32 8, %s27
          %s623 = ssub.s32 128, 128
          %624 = vsyncadd %s614, %s623
          %s625 = smul.addr %s26, 8
          %s626 = sadd.s32 %s621, %s625
          %s627 = smul.addr %s626, 16
          %s628 = scalar_lea.hbm %s4, %s627
          %s629 = sshll.u32 %s617, 4
          %s630 = int_to_ptr.vmem [resolvable:$true] %s629
          %635 = dma.vmem_to_hbm [thread:$0]  %s630, 128, %s628, %s614, 16, 16, 1
        $region52: #{tpu_custom_call.1} parent=35 // pred_fallthru
          _
      $region36: #{tpu_custom_call.1} parent=5 // pred_fallthru
        _
      %p636 = scmp.le.s32.totalorder 2, %s17
      // Predicated region
      $region53: #{tpu_custom_call.1} parent=5 // pred_check
        %p637 = pneg %p636
      $region54: #{tpu_custom_call.1} parent=5 // pred_check_branch
        %639 = sbr.rel (%p637) target = $region56
      $region55: #{tpu_custom_call.1} parent=5 // pred_region
        %s640 = ssub.s32 %s17, 2
        // Predicated region
        $region57: #{tpu_custom_call.1} parent=55 // pred_check
          %p641 = pneg %p166
        $region58: #{tpu_custom_call.1} parent=55 // pred_check_branch
          %643 = sbr.rel (%p641) target = $region60
        $region59: #{tpu_custom_call.1} parent=55 // pred_region
          %s644 = sand.u32 %s151, 1
          %s645 = scalar_lea.sflag [#allocation4], %s644
          %s646 = sand.u32 %s151, 1
          %s647 = smul.addr %s646, 8
          %s648 = scalar_lea.vmem [#allocation8], %s647
          %649 = dma.done %s645, 128
        $region60: #{tpu_custom_call.1} parent=55 // pred_fallthru
          _
      $region56: #{tpu_custom_call.1} parent=5 // pred_fallthru
        _
    $region6: #{tpu_custom_call.1} parent=1 // loop_footer
      %s21 = sadd.s32 1, %s17
    $region7: #{tpu_custom_call.1} parent=1 // loop_footer_branch
      %16 = sbr.rel target = $region3
    $region8: #{tpu_custom_call.1} parent=1 // loop_exit
      _
    %650 = vsyncpa [#allocation3], 1
    %s651 = scalar_lea.sflag [#allocation3], 1
    %652 = vsyncpa %s651, 1
    %653 = vsyncpa [#allocation6], 1
    %654 = vsyncpa [#allocation4], 1
    %s655 = scalar_lea.sflag [#allocation4], 1
    %656 = vsyncpa %s655, 1

</llo_original>
